<compile_context>
chip_gen: v5e
topology: v5e:2x2
jax: 0.10.0
libtpu: 0.0.40
codegen_flags: <defaults>
</compile_context>

<pallas_src>
import math

import jax
import jax.numpy as jnp
from jax.experimental import pallas as pl
from jax.experimental.pallas import tpu as pltpu


# ------------------------------ small helpers ------------------------------ #

def _round_up(x, m):
    return (x + m - 1) // m * m


def _pad2d(a, rows, cols):
    return jnp.pad(a, ((0, rows - a.shape[0]), (0, cols - a.shape[1])))


# ------------------------------ Pallas kernels ------------------------------ #

def _encode_kernel(x_ref, w_ref, b_ref, imp_ref, out_ref):
    # node_encoder (Linear) + importance gating: out = (X @ W + b) * imp
    h = jnp.dot(x_ref[...], w_ref[...], preferred_element_type=jnp.float32)
    out_ref[...] = ((h + b_ref[...]) * imp_ref[...]).astype(out_ref.dtype)


def _xw_kernel(x_ref, w_ref, out_ref):
    # lane-dense hoisted matmul: X_tile @ concat_r(W_r, root)
    out_ref[...] = jnp.dot(x_ref[...], w_ref[...],
                           preferred_element_type=jnp.float32).astype(out_ref.dtype)


def _rgcn_agg_kernel(adj_ref, xw_ref, xroot_ref, invdeg_ref, chan_ref, out_ref,
                     acc_ref, rel_ref):
    # grid = (m: row tiles [parallel], r: relations, k: source-node tiles)
    r = pl.program_id(1)
    k = pl.program_id(2)
    last_r = pl.num_programs(1) - 1
    last_k = pl.num_programs(2) - 1

    @pl.when((r == 0) & (k == 0))
    def _():
        # self-loop (root) transform + bias, once per row tile
        acc_ref[...] = xroot_ref[...].astype(jnp.float32) + chan_ref[0:1, :]

    @pl.when(k == 0)
    def _():
        rel_ref[...] = jnp.zeros_like(rel_ref)

    # message passing for relation r: counts_tile @ (X @ W_r)_tile, f32 accumulation
    rel_ref[...] += jnp.dot(adj_ref[...], xw_ref[...],
                            preferred_element_type=jnp.float32)

    @pl.when(k == last_k)
    def _():
        # mean aggregation: apply 1/|N_r(i)| in f32 (exact-count trick)
        acc_ref[...] += rel_ref[...] * invdeg_ref[...]

    @pl.when((r == last_r) & (k == last_k))
    def _():
        y = jnp.maximum(acc_ref[...], 0.0)                       # ReLU
        y = y * chan_ref[1:2, :] + chan_ref[2:3, :]              # BatchNorm (eval)
        out_ref[...] = y.astype(out_ref.dtype)                   # dropout = identity


# ------------------------------ kernel wrappers ----------------------------- #

def node_encode(x, w, b, imp, *, tm):
    n_pad, in_feat = x.shape
    cp = w.shape[1]
    return pl.pallas_call(
        _encode_kernel,
        out_shape=jax.ShapeDtypeStruct((n_pad, cp), jnp.bfloat16),
        grid_spec=pltpu.PrefetchScalarGridSpec(
            num_scalar_prefetch=0,
            grid=(n_pad // tm,),
            in_specs=[
                pl.BlockSpec((tm, in_feat), lambda m: (m, 0)),
                pl.BlockSpec((in_feat, cp), lambda m: (0, 0)),
                pl.BlockSpec((1, cp), lambda m: (0, 0)),
                pl.BlockSpec((tm, 1), lambda m: (m, 0)),
            ],
            out_specs=pl.BlockSpec((tm, cp), lambda m: (m, 0)),
        ),
        compiler_params=pltpu.CompilerParams(
            dimension_semantics=("parallel",)),
    )(x, w, b, imp)


def xw_matmul(x, w_all, *, tm):
    n_pad, cp_in = x.shape
    k_out = w_all.shape[1]
    return pl.pallas_call(
        _xw_kernel,
        out_shape=jax.ShapeDtypeStruct((n_pad, k_out), jnp.bfloat16),
        grid_spec=pltpu.PrefetchScalarGridSpec(
            num_scalar_prefetch=0,
            grid=(n_pad // tm,),
            in_specs=[
                pl.BlockSpec((tm, cp_in), lambda m: (m, 0)),
                pl.BlockSpec((cp_in, k_out), lambda m: (0, 0)),
            ],
            out_specs=pl.BlockSpec((tm, k_out), lambda m: (m, 0)),
        ),
        compiler_params=pltpu.CompilerParams(
            dimension_semantics=("parallel",)),
    )(x, w_all)


def rgcn_aggregate(cnt, xw_all, inv_deg, chan, *, num_relations, tm, tk):
    n_rel, n_pad, _ = cnt.shape
    cp_out = chan.shape[1]
    # double-buffered inputs + output + f32 scratch, with generous headroom
    est = (2 * (tm * tk * 2 + tk * cp_out * 2 + tm * cp_out * 2 + tm * 8
                + 3 * cp_out * 4 + tm * cp_out * 4)
           + 2 * tm * cp_out * 4)
    vmem_limit = int(min(max(32 * 2 ** 20, 4 * est), 120 * 2 ** 20))
    return pl.pallas_call(
        _rgcn_agg_kernel,
        out_shape=jax.ShapeDtypeStruct((n_pad, cp_out), jnp.float32),
        grid_spec=pltpu.PrefetchScalarGridSpec(
            num_scalar_prefetch=0,
            grid=(n_pad // tm, n_rel, n_pad // tk),
            in_specs=[
                # adj edge counts (bf16, exact) for relation r, rows m, cols k
                pl.BlockSpec((pl.Squeezed(), tm, tk), lambda m, r, k: (r, m, k)),
                # XW slab: relation-r channel slice, source-row tile k
                pl.BlockSpec((tk, cp_out), lambda m, r, k: (k, r)),
                # X @ root slice (last block of the same slab), target-row tile m
                pl.BlockSpec((tm, cp_out), lambda m, r, k: (m, num_relations)),
                # f32 1/deg per (relation, target node)
                pl.BlockSpec((pl.Squeezed(), tm, 1), lambda m, r, k: (r, m, 0)),
                # [bias; bn_scale; bn_shift]
                pl.BlockSpec((3, cp_out), lambda m, r, k: (0, 0)),
            ],
            out_specs=pl.BlockSpec((tm, cp_out), lambda m, r, k: (m, 0)),
            scratch_shapes=[pltpu.VMEM((tm, cp_out), jnp.float32),
                            pltpu.VMEM((tm, cp_out), jnp.float32)],
        ),
        compiler_params=pltpu.CompilerParams(
            dimension_semantics=("parallel", "arbitrary", "arbitrary"),
            vmem_limit_bytes=vmem_limit),
    )(cnt, xw_all, xw_all, inv_deg, chan)


# -------------------------------- glue (JAX) -------------------------------- #

def build_adjacency(edge_index, edge_type, num_nodes, num_relations):
    """Dense per-relation edge counts and f32 inverse in-degree (mean agg)."""
    src, dst = edge_index[0], edge_index[1]
    cnt = jnp.zeros((num_relations, num_nodes, num_nodes), jnp.float32)
    cnt = cnt.at[edge_type, dst, src].add(1.0)
    deg = cnt.sum(axis=2, keepdims=True)                 # |N_r(i)|
    inv_deg = 1.0 / jnp.maximum(deg, 1.0)
    return cnt, inv_deg


def init_params(key, in_feat, in_channels, dims, out_channels,
                num_layers, num_relations, num_bases):
    params = {}
    k_enc_w, k_enc_b, key = jax.random.split(key, 3)
    params["enc_w"] = 0.1 * jax.random.normal(k_enc_w, (in_feat, in_channels), jnp.float32)
    params["enc_b"] = 0.1 * jax.random.normal(k_enc_b, (in_channels,), jnp.float32)

    layer_dims = [(in_channels, dims)]
    for _ in range(1, num_layers - 1):
        layer_dims.append((dims, dims))
    layer_dims.append((dims, out_channels))

    layers = []
    eps = 1e-5
    for (c_in, c_out) in layer_dims:
        k1, k2, k3, k4, key = jax.random.split(key, 5)
        bases = 0.1 * jax.random.normal(k1, (num_bases, c_in, c_out), jnp.float32)
        comp = 0.1 * jax.random.normal(k2, (num_relations, num_bases), jnp.float32)
        w_rel = jnp.einsum("rb,bio->rio", comp, bases)        # basis decomposition
        root = 0.1 * jax.random.normal(k3, (c_in, c_out), jnp.float32)
        bias = 0.1 * jax.random.normal(k4, (c_out,), jnp.float32)
        # BatchNorm (eval): gamma=1, beta=0, running_mean=0, running_var=1
        gamma = jnp.ones((c_out,), jnp.float32)
        beta = jnp.zeros((c_out,), jnp.float32)
        run_mean = jnp.zeros((c_out,), jnp.float32)
        run_var = jnp.ones((c_out,), jnp.float32)
        bn_scale = gamma / jnp.sqrt(run_var + eps)
        bn_shift = beta - run_mean * bn_scale
        layers.append(dict(w_rel=w_rel, root=root, bias=bias,
                           bn_scale=bn_scale, bn_shift=bn_shift))
    params["layers"] = layers
    return params


def rgcn_forward(params, X, X_importance, edge_index, edge_type, index=None, *,
                 num_relations, tm=256, tk=512):
    n, in_feat = X.shape
    out_c = params["layers"][-1]["root"].shape[1]
    n_pad = _round_up(n, math.lcm(tm, tk))

    cnt, inv_deg = build_adjacency(edge_index, edge_type, n_pad, num_relations)
    cnt = cnt.astype(jnp.bfloat16)        # small integer counts: exact in bf16

    cp_enc = _round_up(params["enc_w"].shape[1], 128)
    x_p = jnp.pad(X, ((0, n_pad - n), (0, 0))).astype(jnp.bfloat16)
    imp_p = jnp.pad(X_importance, ((0, n_pad - n), (0, 0))).astype(jnp.float32)
    enc_w = _pad2d(params["enc_w"], in_feat, cp_enc).astype(jnp.bfloat16)
    enc_b = jnp.pad(params["enc_b"], (0, cp_enc - params["enc_b"].shape[0]))
    enc_b = enc_b.reshape(1, cp_enc).astype(jnp.float32)

    x = node_encode(x_p, enc_w, enc_b, imp_p, tm=tm)   # bf16 [n_pad, cp_enc]

    out_f32 = None
    for layer in params["layers"]:
        c_in, c_out = layer["root"].shape
        cp_in = x.shape[1]
        cp_out = _round_up(c_out, 128)
        # lane-dense concat of all relation weights + root: [cp_in, (R+1)*cp_out]
        blocks = [_pad2d(layer["w_rel"][r], cp_in, cp_out)
                  for r in range(num_relations)]
        blocks.append(_pad2d(layer["root"], cp_in, cp_out))
        w_all = jnp.concatenate(blocks, axis=1).astype(jnp.bfloat16)
        chan = jnp.stack([
            jnp.pad(layer["bias"], (0, cp_out - c_out)),
            jnp.pad(layer["bn_scale"], (0, cp_out - c_out), constant_values=1.0),
            jnp.pad(layer["bn_shift"], (0, cp_out - c_out)),
        ]).astype(jnp.float32)

        xw_all = xw_matmul(x, w_all, tm=tm)            # hoisted X@[W_r..., root]
        out_f32 = rgcn_aggregate(cnt, xw_all, inv_deg, chan,
                                 num_relations=num_relations, tm=tm, tk=tk)
        x = out_f32.astype(jnp.bfloat16)
    return out_f32[:n, :out_c]


# ------------------------------- references --------------------------------- #

def rgcn_forward_ref_bf16(params, X, X_importance, edge_index, edge_type, *,
                          num_relations):
    """Pure-JAX reference replicating the kernel's bf16/f32 precision path."""
    bf = jnp.bfloat16
    n = X.shape[0]
    cnt, inv_deg = build_adjacency(edge_index, edge_type, n, num_relations)
    cnt = cnt.astype(bf)
    h = jnp.dot(X.astype(bf), params["enc_w"].astype(bf),
                preferred_element_type=jnp.float32)
    x = ((h + params["enc_b"]) * X_importance).astype(bf)
    out = None
    for layer in params["layers"]:
        xw = jnp.einsum("nc,rco->rno", x, layer["w_rel"].astype(bf),
                        preferred_element_type=jnp.float32).astype(bf)
        xroot = jnp.dot(x, layer["root"].astype(bf),
                        preferred_element_type=jnp.float32).astype(bf)
        agg = jnp.einsum("rmn,rno->rmo", cnt, xw,
                         preferred_element_type=jnp.float32)
        agg = (agg * inv_deg).sum(axis=0)
        out = xroot.astype(jnp.float32) + layer["bias"] + agg
        out = jnp.maximum(out, 0.0) * layer["bn_scale"] + layer["bn_shift"]
        x = out.astype(bf)
    return out


def rgcn_forward_ref_f32(params, X, X_importance, edge_index, edge_type, *,
                         num_relations):
    """Full-f32 semantic reference (original module math)."""
    n = X.shape[0]
    cnt, inv_deg = build_adjacency(edge_index, edge_type, n, num_relations)
    adj = cnt * inv_deg
    x = (X @ params["enc_w"] + params["enc_b"]) * X_importance
    for layer in params["layers"]:
        out = x @ layer["root"] + layer["bias"]
        out = out + jnp.einsum("rij,rjc->ic",
                               adj, jnp.einsum("jk,rkc->rjc", x, layer["w_rel"]))
        out = jnp.maximum(out, 0.0)
        x = out * layer["bn_scale"] + layer["bn_shift"]
    return x


# ---------------------------------- main ------------------------------------ #

if __name__ == "__main__":
    key = jax.random.PRNGKey(0)

    # small synthetic problem (big enough to exercise the 128-wide tiling)
    N, E = 256, 1024
    in_feat, in_channels, dims, out_channels = 16, 16, 32, 8
    num_layers, num_relations, num_bases = 3, 4, 2

    k_x, k_imp, k_src, k_dst, k_et, k_params = jax.random.split(key, 6)
    X = jax.random.normal(k_x, (N, in_feat), jnp.float32)
    X_importance = jax.random.uniform(k_imp, (N, 1), jnp.float32)
    edge_index = jnp.stack([
        jax.random.randint(k_src, (E,), 0, N),
        jax.random.randint(k_dst, (E,), 0, N),
    ])
    edge_type = jax.random.randint(k_et, (E,), 0, num_relations)
    index = jnp.arange(N)  # unused by forward (kept for signature parity)

    params = init_params(k_params, in_feat, in_channels, dims, out_channels,
                         num_layers, num_relations, num_bases)

    out = rgcn_forward(params, X, X_importance, edge_index, edge_type, index,
                       num_relations=num_relations, tm=128, tk=128)
    out = jax.block_until_ready(out)
    assert out.shape == (N, out_channels)

    ref_bf16 = rgcn_forward_ref_bf16(params, X, X_importance, edge_index,
                                     edge_type, num_relations=num_relations)
    assert jnp.allclose(out, ref_bf16, rtol=1e-3, atol=1e-3), \
        float(jnp.max(jnp.abs(out - ref_bf16)))

    ref_f32 = rgcn_forward_ref_f32(params, X, X_importance, edge_index,
                                   edge_type, num_relations=num_relations)
    assert jnp.allclose(out, ref_f32, rtol=5e-2, atol=5e-2), \
        float(jnp.max(jnp.abs(out - ref_f32)))

    print("KERNEL_OK")
</pallas_src>

<mosaic_0001>
module attributes {stable_mosaic.version = 11 : i64} {
  func.func @_encode_kernel(%arg0: i32, %arg1: memref<128x16xbf16, #tpu.memory_space<vmem>>, %arg2: memref<16x128xbf16, #tpu.memory_space<vmem>>, %arg3: memref<1x128xf32, #tpu.memory_space<vmem>>, %arg4: memref<128x1xf32, #tpu.memory_space<vmem>>, %arg5: memref<128x128xbf16, #tpu.memory_space<vmem>>) attributes {dimension_semantics = [#tpu.dimension_semantics<parallel>], iteration_bounds = array<i64: 2>, scalar_prefetch = 0 : i64, scratch_operands = 0 : i64, tpu.core_type = #tpu.core_type<tc>, window_params = [{transform_indices = @transform_0, window_bounds = array<i64: 128, 16>}, {pipeline_mode = #tpu.pipeline_mode<synchronous>, transform_indices = @transform_1, window_bounds = array<i64: 16, 128>}, {pipeline_mode = #tpu.pipeline_mode<synchronous>, transform_indices = @transform_2, window_bounds = array<i64: 1, 128>}, {transform_indices = @transform_3, window_bounds = array<i64: 128, 1>}, {transform_indices = @transform_4, window_bounds = array<i64: 128, 128>}]} {
    %c0 = arith.constant 0 : index
    %c0_0 = arith.constant 0 : index
    %0 = vector.load %arg1[%c0, %c0_0] : memref<128x16xbf16, #tpu.memory_space<vmem>>, vector<128x16xbf16>
    %c0_1 = arith.constant 0 : index
    %c0_2 = arith.constant 0 : index
    %1 = vector.load %arg2[%c0_1, %c0_2] : memref<16x128xbf16, #tpu.memory_space<vmem>>, vector<16x128xbf16>
    %cst = arith.constant dense<0.000000e+00> : vector<128x128xf32>
    %2 = tpu.matmul %0, %1, %cst {dimension_numbers = #tpu.dot_dimension_numbers<[1], [0], [0], [1], [0, 0, 1, 1], [], []>} : vector<128x16xbf16>, vector<16x128xbf16>, vector<128x128xf32> -> vector<128x128xf32>
    %c0_3 = arith.constant 0 : index
    %c0_4 = arith.constant 0 : index
    %3 = vector.load %arg3[%c0_3, %c0_4] : memref<1x128xf32, #tpu.memory_space<vmem>>, vector<1x128xf32>
    %4 = vector.broadcast %3 : vector<1x128xf32> to vector<128x128xf32>
    %5 = arith.addf %2, %4 : vector<128x128xf32>
    %c0_5 = arith.constant 0 : index
    %c0_6 = arith.constant 0 : index
    %6 = vector.load %arg4[%c0_5, %c0_6] : memref<128x1xf32, #tpu.memory_space<vmem>>, vector<128x1xf32>
    %7 = vector.broadcast %6 : vector<128x1xf32> to vector<128x128xf32>
    %8 = arith.mulf %5, %7 : vector<128x128xf32>
    %9 = arith.truncf %8 : vector<128x128xf32> to vector<128x128xbf16>
    %c0_7 = arith.constant 0 : index
    %c0_8 = arith.constant 0 : index
    %10 = vector.load %arg5[%c0_7, %c0_8] : memref<128x128xbf16, #tpu.memory_space<vmem>>, vector<128x128xbf16>
    tpu.vector_store %arg5[%c0_7, %c0_8], %9 {strides = array<i32>} : memref<128x128xbf16, #tpu.memory_space<vmem>>, vector<128x128xbf16>,
    return
  }
  func.func @transform_0(%arg0: i32) -> (i32, i32) {
    %c0_i32 = arith.constant 0 : i32
    %c0_i32_0 = arith.constant 0 : i32
    return %arg0, %c0_i32 : i32, i32
  }
  func.func @transform_1(%arg0: i32) -> (i32, i32) {
    %c0_i32 = arith.constant 0 : i32
    %c0_i32_0 = arith.constant 0 : i32
    %c0_i32_1 = arith.constant 0 : i32
    return %c0_i32, %c0_i32_0 : i32, i32
  }
  func.func @transform_2(%arg0: i32) -> (i32, i32) {
    %c0_i32 = arith.constant 0 : i32
    %c0_i32_0 = arith.constant 0 : i32
    %c0_i32_1 = arith.constant 0 : i32
    return %c0_i32, %c0_i32_0 : i32, i32
  }
  func.func @transform_3(%arg0: i32) -> (i32, i32) {
    %c0_i32 = arith.constant 0 : i32
    %c0_i32_0 = arith.constant 0 : i32
    return %arg0, %c0_i32 : i32, i32
  }
  func.func @transform_4(%arg0: i32) -> (i32, i32) {
    %c0_i32 = arith.constant 0 : i32
    %c0_i32_0 = arith.constant 0 : i32
    return %arg0, %c0_i32 : i32, i32
  }
}

</mosaic_0001>

<llo_original>
// kernel: tpu_custom_call.1
$region0: #{tpu_custom_call.1}
  #allocation0 [shape = 'u32[]', space=smem, size = 0x4, offset = 0x4, fixed_abs, tag = 'smem constant byte address 0x4 - core index']
  #allocation1 [shape = 'u32[72,128]{1,0:T(1,128)}', space=vmem, size = 0x9000, scoped, tag = 'internal scratch']
  %s0 = inlined_call_operand.vmem [shape: bf16[256,16], index: 0, kind: input, shape index: {}]
  %s1 = inlined_call_operand.vmem [shape: bf16[16,128], index: 1, kind: input, shape index: {}]
  %s2 = inlined_call_operand.vmem [shape: f32[1,128], index: 2, kind: input, shape index: {}]
  %s3 = inlined_call_operand.vmem [shape: f32[256,1], index: 3, kind: input, shape index: {}]
  %s4 = inlined_call_operand.hbm [shape: bf16[256,128], index: 4, kind: output, shape index: {}]
  %s5 = sld [smem:[#allocation0]]
  $region49: #{tpu_custom_call.1} parent=0
    _
  %s7 = ssub.s32 1, %s5
  %s8 = scalar_select 0, %s7, %s5
  $region1: #{tpu_custom_call.1} parent=0
    #allocation2 [shape = 'u8[65536]{0}', space=vmem, size = 0x10000, scoped, tag = 'output window, operand 0']
    #allocation3 [shape = 's32[2]{0}', space=sflag, size = 0x8, scoped, tag = 'scoped memory for tpu_custom_call.1']
    %9 = vsyncpa [#allocation3], 0
    %s10 = scalar_lea.sflag [#allocation3], 1
    %11 = vsyncpa %s10, 0
    loop: start=0, step=1, limit=4
    $region2: #{tpu_custom_call.1} parent=1 // loop_pre_header
      _
    $region3: #{tpu_custom_call.1} parent=1 // loop_header
      %s13 = sphi 0, %s17
      %p14 = scmp.ge.s32.totalorder %s13, 4
      %s23 = sphi 0, %s25
      %s26 = sphi 0, %s23
      %s27 = sphi 0, %s26
      %s43 = sphi 0, %s27
      %s47 = sphi 0, %s47
      %s49 = sphi 0, %s47
      %s50 = sphi 0, %s49
      %s64 = sphi 0, %s50
      %s68 = sphi 0, %s68
      %s70 = sphi 0, %s68
      %s71 = sphi 0, %s70
      %s85 = sphi 0, %s71
      %s91 = sphi 0, %s93
      %s94 = sphi 0, %s91
      %s95 = sphi 0, %s94
      %s111 = sphi 0, %s95
      %s117 = sphi 0, %s119
      %s120 = sphi 0, %s117
      %s121 = sphi 0, %s120
      %s137 = sphi 0, %s121
    $region4: #{tpu_custom_call.1} parent=1 // loop_header_branch
      %16 = sbr.rel (%p14) target = $region8
    $region5: #{tpu_custom_call.1} parent=1 // loop_body
      %s18 = ssub.s32 %s13, 1
      %s19 = ssub.s32 %s13, 2
      %s20 = sadd.s32 %s13, 1
      %s21 = ssub.s32 %s13, %s20
      %p22 = scmp.eq.s32.totalorder %s21, 0
      %s24 = sadd.s32 %s23, 1
      %s25 = scalar_select %p22, %s23, %s24
      %p28 = pneg %p22
      %p29 = scmp.eq.s32.totalorder %s13, 1
      %p30 = por %p28, %p29
      %p31 = scmp.ne.s32.totalorder %s23, %s26
      %p32 = scmp.eq.s32.totalorder %s13, 0
      %p33 = por %p31, %p32
      %p34 = scmp.ne.s32.totalorder %s23, %s26
      %p35 = scmp.eq.s32.totalorder %s18, 1
      %p36 = por %p34, %p35
      %p37 = scmp.ne.s32.totalorder %s26, %s27
      %p38 = scmp.eq.s32.totalorder %s18, 0
      %p39 = por %p37, %p38
      %p40 = scmp.ne.s32.totalorder %s26, %s27
      %p41 = scmp.eq.s32.totalorder %s19, 1
      %p42 = por %p40, %p41
      %p44 = scmp.ne.s32.totalorder %s27, %s43
      %p45 = scmp.eq.s32.totalorder %s19, 0
      %p46 = por %p44, %p45
      %s48 = sadd.s32 %s47, 1
      %p51 = scmp.eq.s32.totalorder %s13, 1
      %p52 = scmp.ne.s32.totalorder %s47, %s49
      %p53 = scmp.eq.s32.totalorder %s13, 0
      %p54 = por %p52, %p53
      %p55 = scmp.ne.s32.totalorder %s47, %s49
      %p56 = scmp.eq.s32.totalorder %s18, 1
      %p57 = por %p55, %p56
      %p58 = scmp.ne.s32.totalorder %s49, %s50
      %p59 = scmp.eq.s32.totalorder %s18, 0
      %p60 = por %p58, %p59
      %p61 = scmp.ne.s32.totalorder %s49, %s50
      %p62 = scmp.eq.s32.totalorder %s19, 1
      %p63 = por %p61, %p62
      %p65 = scmp.ne.s32.totalorder %s50, %s64
      %p66 = scmp.eq.s32.totalorder %s19, 0
      %p67 = por %p65, %p66
      %s69 = sadd.s32 %s68, 1
      %p72 = scmp.eq.s32.totalorder %s13, 1
      %p73 = scmp.ne.s32.totalorder %s68, %s70
      %p74 = scmp.eq.s32.totalorder %s13, 0
      %p75 = por %p73, %p74
      %p76 = scmp.ne.s32.totalorder %s68, %s70
      %p77 = scmp.eq.s32.totalorder %s18, 1
      %p78 = por %p76, %p77
      %p79 = scmp.ne.s32.totalorder %s70, %s71
      %p80 = scmp.eq.s32.totalorder %s18, 0
      %p81 = por %p79, %p80
      %p82 = scmp.ne.s32.totalorder %s70, %s71
      %p83 = scmp.eq.s32.totalorder %s19, 1
      %p84 = por %p82, %p83
      %p86 = scmp.ne.s32.totalorder %s71, %s85
      %p87 = scmp.eq.s32.totalorder %s19, 0
      %p88 = por %p86, %p87
      %s89 = ssub.s32 %s13, %s20
      %p90 = scmp.eq.s32.totalorder %s89, 0
      %s92 = sadd.s32 %s91, 1
      %s93 = scalar_select %p90, %s91, %s92
      %p96 = pneg %p90
      %p97 = scmp.eq.s32.totalorder %s13, 1
      %p98 = por %p96, %p97
      %p99 = scmp.ne.s32.totalorder %s91, %s94
      %p100 = scmp.eq.s32.totalorder %s13, 0
      %p101 = por %p99, %p100
      %p102 = scmp.ne.s32.totalorder %s91, %s94
      %p103 = scmp.eq.s32.totalorder %s18, 1
      %p104 = por %p102, %p103
      %p105 = scmp.ne.s32.totalorder %s94, %s95
      %p106 = scmp.eq.s32.totalorder %s18, 0
      %p107 = por %p105, %p106
      %p108 = scmp.ne.s32.totalorder %s94, %s95
      %p109 = scmp.eq.s32.totalorder %s19, 1
      %p110 = por %p108, %p109
      %p112 = scmp.ne.s32.totalorder %s95, %s111
      %p113 = scmp.eq.s32.totalorder %s19, 0
      %p114 = por %p112, %p113
      %s115 = ssub.s32 %s13, %s20
      %p116 = scmp.eq.s32.totalorder %s115, 0
      %s118 = sadd.s32 %s117, 1
      %s119 = scalar_select %p116, %s117, %s118
      %p122 = pneg %p116
      %p123 = scmp.eq.s32.totalorder %s13, 1
      %p124 = por %p122, %p123
      %p125 = scmp.ne.s32.totalorder %s117, %s120
      %p126 = scmp.eq.s32.totalorder %s13, 0
      %p127 = por %p125, %p126
      %p128 = scmp.ne.s32.totalorder %s117, %s120
      %p129 = scmp.eq.s32.totalorder %s18, 1
      %p130 = por %p128, %p129
      %p131 = scmp.ne.s32.totalorder %s120, %s121
      %p132 = scmp.eq.s32.totalorder %s18, 0
      %p133 = por %p131, %p132
      %p134 = scmp.ne.s32.totalorder %s120, %s121
      %p135 = scmp.eq.s32.totalorder %s19, 1
      %p136 = por %p134, %p135
      %p138 = scmp.ne.s32.totalorder %s121, %s137
      %p139 = scmp.eq.s32.totalorder %s19, 0
      %p140 = por %p138, %p139
      %p141 = scmp.le.s32.totalorder 1, %s13
      %p142 = scmp.lt.s32.totalorder %s13, 3
      %p143 = pnand %p141, %p142
      %p144 = pneg %p143
      // Predicated region
      $region9: #{tpu_custom_call.1} parent=5 // pred_check
        _
      $region10: #{tpu_custom_call.1} parent=5 // pred_check_branch
        %146 = sbr.rel (%p143) target = $region12
      $region11: #{tpu_custom_call.1} parent=5 // pred_region
        %s147 = ssub.s32 %s13, 1
        // Predicated region
        $region13: #{tpu_custom_call.1} parent=11 // pred_check
          %p148 = pneg %p60
        $region14: #{tpu_custom_call.1} parent=11 // pred_check_branch
          %150 = sbr.rel (%p148) target = $region16
        $region15: #{tpu_custom_call.1} parent=11 // pred_region
          _
        $region16: #{tpu_custom_call.1} parent=11 // pred_fallthru
          _
        // Predicated region
        $region17: #{tpu_custom_call.1} parent=11 // pred_check
          %p151 = pneg %p81
        $region18: #{tpu_custom_call.1} parent=11 // pred_check_branch
          %153 = sbr.rel (%p151) target = $region20
        $region19: #{tpu_custom_call.1} parent=11 // pred_region
          _
        $region20: #{tpu_custom_call.1} parent=11 // pred_fallthru
          _
      $region12: #{tpu_custom_call.1} parent=5 // pred_fallthru
        _
      %p154 = scmp.lt.s32.totalorder %s13, 2
      // Predicated region
      $region21: #{tpu_custom_call.1} parent=5 // pred_check
        %p155 = pneg %p154
      $region22: #{tpu_custom_call.1} parent=5 // pred_check_branch
        %157 = sbr.rel (%p155) target = $region24
      $region23: #{tpu_custom_call.1} parent=5 // pred_region
        // Predicated region
        $region25: #{tpu_custom_call.1} parent=23 // pred_check
          %p158 = pneg %p33
        $region26: #{tpu_custom_call.1} parent=23 // pred_check_branch
          %160 = sbr.rel (%p158) target = $region28
        $region27: #{tpu_custom_call.1} parent=23 // pred_region
          %s161 = smul.u32 16, %s13
          %p162 = scmp.lt.s32.totalorder %s161, 31
          %s163 = scalar_select %p162, %s161, 31
          %s164 = smul.addr %s163, 4
          %s165 = scalar_lea.vmem %s0, %s164
          %s166 = smul.u32 16, %s13
        $region28: #{tpu_custom_call.1} parent=23 // pred_fallthru
          _
        // Predicated region
        $region29: #{tpu_custom_call.1} parent=23 // pred_check
          %p167 = pneg %p101
        $region30: #{tpu_custom_call.1} parent=23 // pred_check_branch
          %169 = sbr.rel (%p167) target = $region32
        $region31: #{tpu_custom_call.1} parent=23 // pred_region
          %s170 = smul.u32 16, %s13
          %p171 = scmp.lt.s32.totalorder %s170, 31
          %s172 = scalar_select %p171, %s170, 31
          %s173 = smul.addr %s172, 8
          %s174 = scalar_lea.vmem %s3, %s173
          %s175 = smul.u32 16, %s13
        $region32: #{tpu_custom_call.1} parent=23 // pred_fallthru
          _
      $region24: #{tpu_custom_call.1} parent=5 // pred_fallthru
        _
      %p176 = scmp.le.s32.totalorder 1, %s13
      %p177 = scmp.lt.s32.totalorder %s13, 3
      %p178 = pnand %p176, %p177
      %p179 = pneg %p178
      // Predicated region
      $region33: #{tpu_custom_call.1} parent=5 // pred_check
        _
      $region34: #{tpu_custom_call.1} parent=5 // pred_check_branch
        %181 = sbr.rel (%p178) target = $region36
      $region35: #{tpu_custom_call.1} parent=5 // pred_region
        %s182 = ssub.s32 %s13, 1
        %s183 = smul.u32 16, %s18
        %p184 = scmp.lt.s32.totalorder %s183, 31
        %s185 = scalar_select %p184, %s183, 31
        %s186 = smul.addr %s185, 4
        %s187 = scalar_lea.vmem %s0, %s186
        %p188 = pneg %p39
        %p189 = pneg %p36
        %p190 = pneg %p60
        %p191 = pneg %p57
        %p192 = pneg %p81
        %p193 = pneg %p78
        %s194 = smul.u32 16, %s18
        %p195 = scmp.lt.s32.totalorder %s194, 31
        %s196 = scalar_select %p195, %s194, 31
        %s197 = smul.addr %s196, 8
        %s198 = scalar_lea.vmem %s3, %s197
        %p199 = pneg %p107
        %p200 = pneg %p104
        %p201 = pneg %p133
        %p202 = pneg %p130
        %s203 = sand.u32 %s120, 1
        %s204 = scalar_lea.sflag [#allocation3], %s203
        %s205 = sand.u32 %s120, 1
        %s206 = smul.addr %s205, 64
        %s207 = scalar_lea.vmem [#allocation2], %s206
        %s208 = smul.u32 16, %s18
        %p209 = scmp.lt.s32.totalorder %s208, 31
        %s210 = scalar_select %p209, %s208, 31
        %s211 = smul.addr %s210, 4
        %s212 = scalar_lea.vmem %s0, %s211
        %s213 = smul.u32 16, %s18
        %s214 = smul.u32 16, %s18
        %p215 = scmp.lt.s32.totalorder %s214, 31
        %s216 = scalar_select %p215, %s214, 31
        %s217 = smul.addr %s216, 8
        %s218 = scalar_lea.vmem %s3, %s217
        %s219 = smul.u32 16, %s18
        %s220 = smul.u32 16, %s18
        %v222 = vld [vmem:[%s212] sm:$0xf]
        %v223 = vld [vmem:[%s212 + $0x4] sm:$0xf]
        %v224 = vld [vmem:[%s212 + $0x8] sm:$0xf]
        %v225 = vld [vmem:[%s212 + $0xc] sm:$0xf]
        %v226 = vld [vmem:[%s212 + $0x10] sm:$0xf]
        %v227 = vld [vmem:[%s212 + $0x14] sm:$0xf]
        %v228 = vld [vmem:[%s212 + $0x18] sm:$0xf]
        %v229 = vld [vmem:[%s212 + $0x1c] sm:$0xf]
        %v230 = vld [vmem:[%s212 + $0x20] sm:$0xf]
        %v231 = vld [vmem:[%s212 + $0x24] sm:$0xf]
        %v232 = vld [vmem:[%s212 + $0x28] sm:$0xf]
        %v233 = vld [vmem:[%s212 + $0x2c] sm:$0xf]
        %v234 = vld [vmem:[%s212 + $0x30] sm:$0xf]
        %v235 = vld [vmem:[%s212 + $0x34] sm:$0xf]
        %v236 = vld [vmem:[%s212 + $0x38] sm:$0xf]
        %v237 = vld [vmem:[%s212 + $0x3c] sm:$0xf]
        %v238 = vld [vmem:[%s1] sm:$0xf]
        %v239 = vld [vmem:[%s1 + $0x4] sm:$0xf]
        %v240 = vld [vmem:[%s2] sm:$0x1]
        %v242 = vperm.slane %v240, 0
        %v260 = vunpack.c.l.b16 %v222
        %v261 = vunpack.c.l.b16 %v223
        %v262 = vunpack.c.l.b16 %v224
        %v263 = vunpack.c.l.b16 %v225
        %v264 = vunpack.c.l.b16 %v226
        %v265 = vunpack.c.l.b16 %v227
        %v266 = vunpack.c.l.b16 %v228
        %v267 = vunpack.c.l.b16 %v229
        %v268 = vunpack.c.l.b16 %v230
        %v269 = vunpack.c.l.b16 %v231
        %v270 = vunpack.c.l.b16 %v232
        %v271 = vunpack.c.l.b16 %v233
        %v272 = vunpack.c.l.b16 %v234
        %v273 = vunpack.c.l.b16 %v235
        %v274 = vunpack.c.l.b16 %v236
        %v275 = vunpack.c.l.b16 %v237
        %v276 = vpack.c.b16 %v261, %v260
        %v277 = vpack.c.b16 %v263, %v262
        %v278 = vpack.c.b16 %v265, %v264
        %v279 = vpack.c.b16 %v267, %v266
        %v280 = vpack.c.b16 %v269, %v268
        %v281 = vpack.c.b16 %v271, %v270
        %v282 = vpack.c.b16 %v273, %v272
        %v283 = vpack.c.b16 %v275, %v274
        %v286 = vunpack.c.l.b16 %v238
        %v287 = vunpack.c.l.b16 %v239
        %v288 = vpack.c.b16 %v287, %v286
        %vm290 = vcmask 130048
        %v292 = vsel %vm290, %v276, 0
        %v295 = vsel %vm290, %v277, 0
        %v298 = vsel %vm290, %v278, 0
        %v301 = vsel %vm290, %v279, 0
        %v304 = vsel %vm290, %v280, 0
        %v307 = vsel %vm290, %v281, 0
        %v310 = vsel %vm290, %v282, 0
        %v313 = vsel %vm290, %v283, 0
        %315 = vmatpush.bf16.msra.mxu0 0
        %316 = vmatpush.bf16.msra.mxu0 0
        %317 = vmatpush.bf16.msra.mxu0 0
        %318 = vmatpush.bf16.msra.mxu0 0
        %319 = vmatpush.bf16.msra.mxu0 0
        %320 = vmatpush.bf16.msra.mxu0 0
        %321 = vmatpush.bf16.msra.mxu0 0
        %322 = vmatpush.bf16.msra.mxu0 %v288
        %323 = vmatmul.bf16.gmra.mxu0 %v292
        %v324 = vpop.f32.mrf.mxu0
        %v325 = vadd.f32 %v242, %v324
        %v326 = vpop.f32.mrf.mxu0
        %v327 = vadd.f32 %v242, %v326
        %328 = vmatmul.bf16.gmra.mxu0 %v295
        %v329 = vpop.f32.mrf.mxu0
        %v330 = vadd.f32 %v242, %v329
        %v331 = vpop.f32.mrf.mxu0
        %v332 = vadd.f32 %v242, %v331
        %333 = vmatmul.bf16.gmra.mxu0 %v298
        %v334 = vpop.f32.mrf.mxu0
        %v335 = vadd.f32 %v242, %v334
        %v336 = vpop.f32.mrf.mxu0
        %v337 = vadd.f32 %v242, %v336
        %338 = vmatmul.bf16.gmra.mxu0 %v301
        %v339 = vpop.f32.mrf.mxu0
        %v340 = vadd.f32 %v242, %v339
        %v341 = vpop.f32.mrf.mxu0
        %v342 = vadd.f32 %v242, %v341
        %343 = vmatmul.bf16.gmra.mxu0 %v304
        %v344 = vpop.f32.mrf.mxu0
        %v345 = vadd.f32 %v242, %v344
        %v346 = vpop.f32.mrf.mxu0
        %v347 = vadd.f32 %v242, %v346
        %348 = vmatmul.bf16.gmra.mxu0 %v307
        %v349 = vpop.f32.mrf.mxu0
        %v350 = vadd.f32 %v242, %v349
        %v351 = vpop.f32.mrf.mxu0
        %v352 = vadd.f32 %v242, %v351
        %353 = vmatmul.bf16.gmra.mxu0 %v310
        %v354 = vpop.f32.mrf.mxu0
        %v355 = vadd.f32 %v242, %v354
        %v356 = vpop.f32.mrf.mxu0
        %v357 = vadd.f32 %v242, %v356
        %358 = vmatmul.bf16.gmra.mxu0 %v313
        %v359 = vpop.f32.mrf.mxu0
        %v360 = vadd.f32 %v242, %v359
        %v361 = vpop.f32.mrf.mxu0
        %v362 = vadd.f32 %v242, %v361
        %363 = vdwg.mxu0
        %v364 = vld [vmem:[%s218] sm:$0xff]
        %v365 = vld [vmem:[%s218 + $0x8] sm:$0xff]
        %v366 = vld [vmem:[%s218 + $0x10] sm:$0xff]
        %v367 = vld [vmem:[%s218 + $0x18] sm:$0xff]
        %v368 = vld [vmem:[%s218 + $0x20] sm:$0xff]
        %v369 = vld [vmem:[%s218 + $0x28] sm:$0xff]
        %v370 = vld [vmem:[%s218 + $0x30] sm:$0xff]
        %v371 = vld [vmem:[%s218 + $0x38] sm:$0xff]
        %v372 = vld [vmem:[%s218 + $0x40] sm:$0xff]
        %v373 = vld [vmem:[%s218 + $0x48] sm:$0xff]
        %v374 = vld [vmem:[%s218 + $0x50] sm:$0xff]
        %v375 = vld [vmem:[%s218 + $0x58] sm:$0xff]
        %v376 = vld [vmem:[%s218 + $0x60] sm:$0xff]
        %v377 = vld [vmem:[%s218 + $0x68] sm:$0xff]
        %v378 = vld [vmem:[%s218 + $0x70] sm:$0xff]
        %v379 = vld [vmem:[%s218 + $0x78] sm:$0xff]
        %381 = vset.pattern.permute.xlu0 0
        %382 = vperm.xlu0 %381, %v364
        %v383 = vpop.permute.xlu0 %382
        %386 = vset.pattern.permute.xlu0 0
        %387 = vperm.xlu0 %386, %v365
        %v388 = vpop.permute.xlu0 %387
        %391 = vset.pattern.permute.xlu0 0
        %392 = vperm.xlu0 %391, %v366
        %v393 = vpop.permute.xlu0 %392
        %396 = vset.pattern.permute.xlu0 0
        %397 = vperm.xlu0 %396, %v367
        %v398 = vpop.permute.xlu0 %397
        %401 = vset.pattern.permute.xlu0 0
        %402 = vperm.xlu0 %401, %v368
        %v403 = vpop.permute.xlu0 %402
        %406 = vset.pattern.permute.xlu0 0
        %407 = vperm.xlu0 %406, %v369
        %v408 = vpop.permute.xlu0 %407
        %411 = vset.pattern.permute.xlu0 0
        %412 = vperm.xlu0 %411, %v370
        %v413 = vpop.permute.xlu0 %412
        %416 = vset.pattern.permute.xlu0 0
        %417 = vperm.xlu0 %416, %v371
        %v418 = vpop.permute.xlu0 %417
        %421 = vset.pattern.permute.xlu0 0
        %422 = vperm.xlu0 %421, %v372
        %v423 = vpop.permute.xlu0 %422
        %426 = vset.pattern.permute.xlu0 0
        %427 = vperm.xlu0 %426, %v373
        %v428 = vpop.permute.xlu0 %427
        %431 = vset.pattern.permute.xlu0 0
        %432 = vperm.xlu0 %431, %v374
        %v433 = vpop.permute.xlu0 %432
        %436 = vset.pattern.permute.xlu0 0
        %437 = vperm.xlu0 %436, %v375
        %v438 = vpop.permute.xlu0 %437
        %441 = vset.pattern.permute.xlu0 0
        %442 = vperm.xlu0 %441, %v376
        %v443 = vpop.permute.xlu0 %442
        %446 = vset.pattern.permute.xlu0 0
        %447 = vperm.xlu0 %446, %v377
        %v448 = vpop.permute.xlu0 %447
        %451 = vset.pattern.permute.xlu0 0
        %452 = vperm.xlu0 %451, %v378
        %v453 = vpop.permute.xlu0 %452
        %456 = vset.pattern.permute.xlu0 0
        %457 = vperm.xlu0 %456, %v379
        %v458 = vpop.permute.xlu0 %457
        %v460 = vmul.f32 %v325, %v383
        %v461 = vmul.f32 %v327, %v388
        %v462 = vmul.f32 %v330, %v393
        %v463 = vmul.f32 %v332, %v398
        %v464 = vmul.f32 %v335, %v403
        %v465 = vmul.f32 %v337, %v408
        %v466 = vmul.f32 %v340, %v413
        %v467 = vmul.f32 %v342, %v418
        %v468 = vmul.f32 %v345, %v423
        %v469 = vmul.f32 %v347, %v428
        %v470 = vmul.f32 %v350, %v433
        %v471 = vmul.f32 %v352, %v438
        %v472 = vmul.f32 %v355, %v443
        %v473 = vmul.f32 %v357, %v448
        %v474 = vmul.f32 %v360, %v453
        %v475 = vmul.f32 %v362, %v458
        %v476 = vpack.c.bf16 %v460, %v460
        %v477 = vpack.c.bf16 %v461, %v461
        %v478 = vpack.c.bf16 %v462, %v462
        %v479 = vpack.c.bf16 %v463, %v463
        %v480 = vpack.c.bf16 %v464, %v464
        %v481 = vpack.c.bf16 %v465, %v465
        %v482 = vpack.c.bf16 %v466, %v466
        %v483 = vpack.c.bf16 %v467, %v467
        %v484 = vpack.c.bf16 %v468, %v468
        %v485 = vpack.c.bf16 %v469, %v469
        %v486 = vpack.c.bf16 %v470, %v470
        %v487 = vpack.c.bf16 %v471, %v471
        %v488 = vpack.c.bf16 %v472, %v472
        %v489 = vpack.c.bf16 %v473, %v473
        %v490 = vpack.c.bf16 %v474, %v474
        %v491 = vpack.c.bf16 %v475, %v475
        %492 = vst [vmem:[%s207] sm:$0xf] %v476
        %493 = vst [vmem:[%s207 + $0x4] sm:$0xf] %v477
        %494 = vst [vmem:[%s207 + $0x8] sm:$0xf] %v478
        %495 = vst [vmem:[%s207 + $0xc] sm:$0xf] %v479
        %496 = vst [vmem:[%s207 + $0x10] sm:$0xf] %v480
        %497 = vst [vmem:[%s207 + $0x14] sm:$0xf] %v481
        %498 = vst [vmem:[%s207 + $0x18] sm:$0xf] %v482
        %499 = vst [vmem:[%s207 + $0x1c] sm:$0xf] %v483
        %500 = vst [vmem:[%s207 + $0x20] sm:$0xf] %v484
        %501 = vst [vmem:[%s207 + $0x24] sm:$0xf] %v485
        %502 = vst [vmem:[%s207 + $0x28] sm:$0xf] %v486
        %503 = vst [vmem:[%s207 + $0x2c] sm:$0xf] %v487
        %504 = vst [vmem:[%s207 + $0x30] sm:$0xf] %v488
        %505 = vst [vmem:[%s207 + $0x34] sm:$0xf] %v489
        %506 = vst [vmem:[%s207 + $0x38] sm:$0xf] %v490
        %507 = vst [vmem:[%s207 + $0x3c] sm:$0xf] %v491
        %s508 = sand.u32 %s120, 1
        %s509 = scalar_lea.sflag [#allocation3], %s508
        %s510 = sand.u32 %s120, 1
        %s511 = smul.addr %s510, 64
        %s512 = scalar_lea.vmem [#allocation2], %s511
        // Predicated region
        $region37: #{tpu_custom_call.1} parent=35 // pred_check
          %p513 = pneg %p130
        $region38: #{tpu_custom_call.1} parent=35 // pred_check_branch
          %515 = sbr.rel (%p513) target = $region40
        $region39: #{tpu_custom_call.1} parent=35 // pred_region
          %s516 = smul.u32 16, %s18
          %518 = vsyncadd %s509, 0
          %s519 = smul.addr %s516, 4
          %s520 = scalar_lea.hbm %s4, %s519
          %s521 = sshll.u32 %s512, 4
          %s522 = int_to_ptr.vmem [resolvable:$true] %s521
          %s523 = sshll.u32 %s520, 4
          %s524 = int_to_ptr.hbm [resolvable:$true] %s523
          %529 = dma.vmem_to_hbm [thread:$0]  %s522, 1024, %s524, %s509, 64, 64, 4
        $region40: #{tpu_custom_call.1} parent=35 // pred_fallthru
          _
      $region36: #{tpu_custom_call.1} parent=5 // pred_fallthru
        _
      %p530 = scmp.le.s32.totalorder 2, %s13
      // Predicated region
      $region41: #{tpu_custom_call.1} parent=5 // pred_check
        %p531 = pneg %p530
      $region42: #{tpu_custom_call.1} parent=5 // pred_check_branch
        %533 = sbr.rel (%p531) target = $region44
      $region43: #{tpu_custom_call.1} parent=5 // pred_region
        %s534 = ssub.s32 %s13, 2
        // Predicated region
        $region45: #{tpu_custom_call.1} parent=43 // pred_check
          %p535 = pneg %p136
        $region46: #{tpu_custom_call.1} parent=43 // pred_check_branch
          %537 = sbr.rel (%p535) target = $region48
        $region47: #{tpu_custom_call.1} parent=43 // pred_region
          %s538 = sand.u32 %s121, 1
          %s539 = scalar_lea.sflag [#allocation3], %s538
          %s540 = sand.u32 %s121, 1
          %s541 = smul.addr %s540, 64
          %s542 = scalar_lea.vmem [#allocation2], %s541
          %544 = dma.done %s539, 1024
        $region48: #{tpu_custom_call.1} parent=43 // pred_fallthru
          _
      $region44: #{tpu_custom_call.1} parent=5 // pred_fallthru
        _
    $region6: #{tpu_custom_call.1} parent=1 // loop_footer
      %s17 = sadd.s32 1, %s13
    $region7: #{tpu_custom_call.1} parent=1 // loop_footer_branch
      %12 = sbr.rel target = $region3
    $region8: #{tpu_custom_call.1} parent=1 // loop_exit
      _
    %545 = vsyncpa [#allocation3], 1
    %s546 = scalar_lea.sflag [#allocation3], 1
    %547 = vsyncpa %s546, 1

</llo_original>
